<compile_context>
chip_gen: v7x
topology: tpu7x:2x2x1
jax: 0.10.0
libtpu: 0.0.40
codegen_flags: <defaults>
</compile_context>

<pallas_src>
import numpy as np
import jax
import jax.numpy as jnp
from jax.experimental import pallas as pl
from jax.experimental.pallas import tpu as pltpu


def _attention_body(feats_ref, p_att_ref, att_h_ref, iw_ref, wa_ref,
                    att_res_ref, weight_ref):
    f32 = jnp.float32

    att = p_att_ref[...]                                  # (TB, S, H), streamed dtype
    cdt = att.dtype
    if iw_ref is not None:                                # trace-time specialization
        # in_weights arrives as a lane-dense (TB, S) block; one relayout to
        # S-on-sublanes for the broadcast multiply over H.
        att = iw_ref[...].astype(cdt)[:, :, None] * att   # (TB, S, H)

    att_h = att_h_ref[...].astype(cdt)                    # (TB, H)
    pre = jnp.tanh(att + att_h[:, None, :])               # (TB, S, H)  EUP tanh

    # alpha_net: VPU multiply by the (1, H) weight row + lane-axis (H) reduce,
    # accumulated in f32.  keepdims keeps S on the sublane axis (no relayout
    # into lane-major and back).  alpha_net bias dropped: softmax is
    # shift-invariant, so it cannot affect weight or att_res.
    wa = wa_ref[...].astype(f32)                          # (1, H)
    scores = jnp.sum(pre.astype(f32) * wa, axis=-1, keepdims=True)   # (TB, S, 1)

    # Softmax over att_size with S kept on sublanes end-to-end.
    m = jnp.max(scores, axis=1, keepdims=True)            # (TB, 1, 1)
    e = jnp.exp(scores - m)                               # (TB, S, 1)
    denom = jnp.sum(e, axis=1, keepdims=True)             # (TB, 1, 1)
    # EUP approximate reciprocal + 2 Newton steps (tiny VPU work) keeps full
    # f32 accuracy while avoiding a broadcast VALU divide over (TB, S).
    r = pl.reciprocal(denom, approx=True)
    r = r * (2.0 - denom * r)
    r = r * (2.0 - denom * r)
    w = e * r                                             # (TB, S, 1)

    # att_res[b] = sum_s w[b, s] * att_feats[b, s, :]  (f32 accumulation)
    feats = feats_ref[...].astype(f32)                    # (TB, S, R)
    res = jnp.sum(w * feats, axis=1)                      # (TB, R)

    att_res_ref[...] = res.astype(att_res_ref.dtype)      # lane-dense (TB, R)
    # Single relayout per tile: (TB, S, 1) sublane-major -> lane-dense (TB, S).
    weight_ref[...] = w[:, :, 0].astype(weight_ref.dtype)


def _make_kernel(has_iw):
    if has_iw:
        def kernel(feats_ref, p_att_ref, att_h_ref, iw_ref, wa_ref,
                   att_res_ref, weight_ref):
            _attention_body(feats_ref, p_att_ref, att_h_ref, iw_ref, wa_ref,
                            att_res_ref, weight_ref)
    else:
        def kernel(feats_ref, p_att_ref, att_h_ref, wa_ref,
                   att_res_ref, weight_ref):
            _attention_body(feats_ref, p_att_ref, att_h_ref, None, wa_ref,
                            att_res_ref, weight_ref)
    return kernel


def _vmem_limit_bytes():
    """~75% of per-core VMEM: ~96 MiB on v5e/v6e (128 MiB), ~48 MiB on v7x (64 MiB)."""
    cap = None
    try:
        info = pltpu.get_tpu_info()
        cap = getattr(info, "vmem_capacity_bytes", None)
    except Exception:
        cap = None
    if not cap:
        cap = 64 * 1024 * 1024          # conservative default (v7x per-TensorCore)
    cap = min(int(cap), 128 * 1024 * 1024)
    return (cap * 3) // 4


def _choose_batch_tile(B, S, R, H, has_iw, in_itemsize, out_itemsize, vmem_limit):
    """Biggest TB that fits a conservative VMEM budget, multiple of 8 when tiled."""
    # Double-buffered input blocks + double-buffered output blocks + headroom
    # for compiler intermediates ('pre'/'e' live as full (TB,S,H) f32 values).
    per_row = 2 * (S * (R + H) * in_itemsize + H * 4)           # feats + p_att + att_h
    if has_iw:
        per_row += 2 * S * in_itemsize
    per_row += 2 * (R + S) * out_itemsize                       # att_res + weight
    per_row += 2 * S * H * 4                                    # intermediates headroom
    budget = vmem_limit // 2                                    # extra safety margin
    tb = max(1, budget // max(per_row, 1))
    if tb >= B:
        if B >= 16:
            tb = -(-B // 2)              # keep >= 2 grid steps so the "parallel"
            tb = max(8, (tb // 8) * 8)   # batch axis can use both TCs (v7x megacore)
        else:
            return B
    else:
        tb = min(tb, -(-B // 2))
        tb = max(8, (tb // 8) * 8)       # layout-legal second-to-last block dim
    return min(tb, B)


def image_in_attention(att_feats, p_att_feats, hidden, params, in_weights=None,
                       block_b=None):
    """Returns (att_res (B, R), weight (B, S)) — same semantics as the PyTorch forward."""
    B, S, R = att_feats.shape
    H = p_att_feats.shape[-1]
    dtype = att_feats.dtype
    Wh, bh, wa, ba = params            # (R,H), (1,H), (H,1), (1,1); ba is softmax-invariant

    # h2att hoisted to one XLA (B,R)@(R,H) matmul: avoids a per-step M=1 MXU
    # matmul and keeps Wh out of per-kernel VMEM residency.
    att_h = (hidden.astype(jnp.float32) @ Wh.astype(jnp.float32)
             + bh.astype(jnp.float32))                    # (B, H) f32

    has_iw = in_weights is not None
    itemsize = jnp.dtype(dtype).itemsize

    vmem_limit = _vmem_limit_bytes()
    TB = _choose_batch_tile(B, S, R, H, has_iw, itemsize, itemsize, vmem_limit)
    if block_b is not None and int(block_b) < TB:         # optional manual cap
        TB = int(block_b)
        if TB < B:
            TB = max(8, (TB // 8) * 8)
        TB = min(TB, B)

    # No wrapper padding: ragged last block (B % TB != 0) is masked by Pallas.
    grid = (pl.cdiv(B, TB),)

    in_specs = [
        pl.BlockSpec((TB, S, R), lambda b: (b, 0, 0)),    # att_feats
        pl.BlockSpec((TB, S, H), lambda b: (b, 0, 0)),    # p_att_feats
        pl.BlockSpec((TB, H), lambda b: (b, 0)),          # precomputed att_h (f32)
    ]
    inputs = [att_feats, p_att_feats, att_h]

    if has_iw:
        in_specs.append(pl.BlockSpec((TB, S), lambda b: (b, 0)))   # lane-dense (TB,S)
        inputs.append(in_weights.reshape(B, S))

    in_specs.append(pl.BlockSpec((1, H), lambda b: (0, 0)))        # alpha_net weight row
    inputs.append(wa.reshape(1, H))

    out_shape = (jax.ShapeDtypeStruct((B, R), dtype),
                 jax.ShapeDtypeStruct((B, S), dtype))
    out_specs = [pl.BlockSpec((TB, R), lambda b: (b, 0)),          # att_res, lane-dense
                 pl.BlockSpec((TB, S), lambda b: (b, 0))]          # weight, lane-dense

    att_res, weight = pl.pallas_call(
        _make_kernel(has_iw),
        out_shape=out_shape,
        grid_spec=pltpu.PrefetchScalarGridSpec(
            num_scalar_prefetch=0,
            grid=grid,
            in_specs=in_specs,
            out_specs=out_specs,
        ),
        compiler_params=pltpu.CompilerParams(
            dimension_semantics=("parallel",),   # batch axis shards across TCs (v7x)
            vmem_limit_bytes=int(vmem_limit)),
    )(*inputs)

    return att_res, weight


def init_params(key, rnn_size, att_hid_size, dtype=jnp.float32):
    """xavier_uniform(gain=sqrt(2)) weights, constant(0.1) biases, like weight_init()."""
    k1, k2 = jax.random.split(key)
    gain = np.sqrt(2.0)

    # h2att: PyTorch weight shape (att_hid, rnn) -> stored transposed (rnn, att_hid)
    a1 = gain * np.sqrt(6.0 / (rnn_size + att_hid_size))
    Wh = jax.random.uniform(k1, (att_hid_size, rnn_size), dtype, -a1, a1).T   # (R, H)
    bh = jnp.full((1, att_hid_size), 0.1, dtype)

    # alpha_net: PyTorch weight shape (1, att_hid) -> stored transposed (att_hid, 1)
    a2 = gain * np.sqrt(6.0 / (att_hid_size + 1))
    wa = jax.random.uniform(k2, (1, att_hid_size), dtype, -a2, a2).T          # (H, 1)
    ba = jnp.full((1, 1), 0.1, dtype)
    return Wh, bh, wa, ba


def _reference(att_feats, p_att_feats, hidden, params, in_weights=None):
    Wh, bh, wa, ba = params
    att = p_att_feats
    if in_weights is not None:
        att = in_weights[:, :, None] * att
    att_h = hidden @ Wh + bh[0]                            # (B, H)
    dot = jnp.tanh(att + att_h[:, None, :])                # (B, S, H)
    scores = (dot @ wa)[..., 0] + ba[0, 0]                 # (B, S)
    weight = jax.nn.softmax(scores, axis=1)
    att_res = jnp.einsum('bs,bsr->br', weight, att_feats)
    return att_res, weight


if __name__ == "__main__":
    B, S, R, H = 2, 8, 32, 32   # batch, att_size, rnn_size, att_hid_size

    key = jax.random.PRNGKey(0)
    k_af, k_pf, k_h, k_iw, k_p = jax.random.split(key, 5)

    att_feats   = jax.random.normal(k_af, (B, S, R), jnp.float32)
    p_att_feats = jax.random.normal(k_pf, (B, S, H), jnp.float32)
    hidden      = jax.random.normal(k_h,  (B, R),    jnp.float32)
    in_weights  = jax.random.uniform(k_iw, (B, S),   jnp.float32)

    params = init_params(k_p, R, H)

    # 1) with in_weights (lane-dense (TB,S) in_weights stream)
    att_res, weight = image_in_attention(att_feats, p_att_feats, hidden, params,
                                         in_weights=in_weights)
    jax.block_until_ready((att_res, weight))
    ref_res, ref_w = _reference(att_feats, p_att_feats, hidden, params, in_weights)
    np.testing.assert_allclose(np.asarray(att_res), np.asarray(ref_res),
                               rtol=1e-5, atol=1e-5)
    np.testing.assert_allclose(np.asarray(weight), np.asarray(ref_w),
                               rtol=1e-5, atol=1e-5)

    # 2) in_weights=None path (trace-time specialized: no iw stream / multiply)
    att_res2, weight2 = image_in_attention(att_feats, p_att_feats, hidden, params)
    jax.block_until_ready((att_res2, weight2))
    ref_res2, ref_w2 = _reference(att_feats, p_att_feats, hidden, params, None)
    np.testing.assert_allclose(np.asarray(att_res2), np.asarray(ref_res2),
                               rtol=1e-5, atol=1e-5)
    np.testing.assert_allclose(np.asarray(weight2), np.asarray(ref_w2),
                               rtol=1e-5, atol=1e-5)

    # 3) larger batch B=20: TB is capped at a multiple of 8 for a >=2-step
    #    "parallel" grid, and the ragged last block (no wrapper jnp.pad) is
    #    handled by Pallas masking.
    B2 = 20
    kb = jax.random.split(key, 3)
    att_feats_l   = jax.random.normal(kb[0], (B2, S, R), jnp.float32)
    p_att_feats_l = jax.random.normal(kb[1], (B2, S, H), jnp.float32)
    hidden_l      = jax.random.normal(kb[2], (B2, R),    jnp.float32)
    att_res3, weight3 = image_in_attention(att_feats_l, p_att_feats_l, hidden_l, params)
    jax.block_until_ready((att_res3, weight3))
    ref_res3, ref_w3 = _reference(att_feats_l, p_att_feats_l, hidden_l, params, None)
    np.testing.assert_allclose(np.asarray(att_res3), np.asarray(ref_res3),
                               rtol=1e-5, atol=1e-5)
    np.testing.assert_allclose(np.asarray(weight3), np.asarray(ref_w3),
                               rtol=1e-5, atol=1e-5)

    print("KERNEL_OK")
</pallas_src>

<mosaic_0001>
module attributes {stable_mosaic.version = 11 : i64} {
  func.func @kernel(%arg0: i32, %arg1: memref<2x8x32xf32, #tpu.memory_space<vmem>>, %arg2: memref<2x8x32xf32, #tpu.memory_space<vmem>>, %arg3: memref<2x32xf32, #tpu.memory_space<vmem>>, %arg4: memref<2x8xf32, #tpu.memory_space<vmem>>, %arg5: memref<1x32xf32, #tpu.memory_space<vmem>>, %arg6: memref<2x32xf32, #tpu.memory_space<vmem>>, %arg7: memref<2x8xf32, #tpu.memory_space<vmem>>) attributes {dimension_semantics = [#tpu.dimension_semantics<parallel>], iteration_bounds = array<i64: 1>, scalar_prefetch = 0 : i64, scratch_operands = 0 : i64, tpu.core_type = #tpu.core_type<tc>, window_params = [{transform_indices = @transform_0, window_bounds = array<i64: 2, 8, 32>}, {transform_indices = @transform_1, window_bounds = array<i64: 2, 8, 32>}, {transform_indices = @transform_2, window_bounds = array<i64: 2, 32>}, {transform_indices = @transform_3, window_bounds = array<i64: 2, 8>}, {pipeline_mode = #tpu.pipeline_mode<synchronous>, transform_indices = @transform_4, window_bounds = array<i64: 1, 32>}, {transform_indices = @transform_5, window_bounds = array<i64: 2, 32>}, {transform_indices = @transform_6, window_bounds = array<i64: 2, 8>}]} {
    %c0 = arith.constant 0 : index
    %c0_0 = arith.constant 0 : index
    %c0_1 = arith.constant 0 : index
    %0 = vector.load %arg2[%c0, %c0_0, %c0_1] : memref<2x8x32xf32, #tpu.memory_space<vmem>>, vector<2x8x32xf32>
    %c0_2 = arith.constant 0 : index
    %c0_3 = arith.constant 0 : index
    %1 = vector.load %arg4[%c0_2, %c0_3] : memref<2x8xf32, #tpu.memory_space<vmem>>, vector<2x8xf32>
    %2 = vector.shape_cast %1 : vector<2x8xf32> to vector<2x8x1xf32>
    %3 = vector.broadcast %2 : vector<2x8x1xf32> to vector<2x8x32xf32>
    %4 = arith.mulf %3, %0 : vector<2x8x32xf32>
    %c0_4 = arith.constant 0 : index
    %c0_5 = arith.constant 0 : index
    %5 = vector.load %arg3[%c0_4, %c0_5] : memref<2x32xf32, #tpu.memory_space<vmem>>, vector<2x32xf32>
    %6 = vector.shape_cast %5 : vector<2x32xf32> to vector<2x1x32xf32>
    %7 = vector.broadcast %6 : vector<2x1x32xf32> to vector<2x8x32xf32>
    %8 = arith.addf %4, %7 : vector<2x8x32xf32>
    %9 = math.tanh %8 : vector<2x8x32xf32>
    %c0_6 = arith.constant 0 : index
    %c0_7 = arith.constant 0 : index
    %10 = vector.load %arg5[%c0_6, %c0_7] : memref<1x32xf32, #tpu.memory_space<vmem>>, vector<1x32xf32>
    %11 = vector.shape_cast %10 : vector<1x32xf32> to vector<1x1x32xf32>
    %12 = vector.broadcast %11 : vector<1x1x32xf32> to vector<2x8x32xf32>
    %13 = arith.mulf %9, %12 : vector<2x8x32xf32>
    %cst = arith.constant dense<0.000000e+00> : vector<2x8xf32>
    %14 = vector.multi_reduction <add>, %13, %cst [2] : vector<2x8x32xf32> to vector<2x8xf32>
    %15 = vector.shape_cast %14 : vector<2x8xf32> to vector<2x8x1xf32>
    %cst_8 = arith.constant dense<0xFF800000> : vector<2x1xf32>
    %16 = vector.multi_reduction <maximumf>, %15, %cst_8 [1] : vector<2x8x1xf32> to vector<2x1xf32>
    %17 = vector.shape_cast %16 : vector<2x1xf32> to vector<2x1x1xf32>
    %18 = vector.broadcast %17 : vector<2x1x1xf32> to vector<2x8x1xf32>
    %19 = arith.subf %15, %18 : vector<2x8x1xf32>
    %20 = math.exp %19 : vector<2x8x1xf32>
    %cst_9 = arith.constant dense<0.000000e+00> : vector<2x1xf32>
    %21 = vector.multi_reduction <add>, %20, %cst_9 [1] : vector<2x8x1xf32> to vector<2x1xf32>
    %22 = vector.shape_cast %21 : vector<2x1xf32> to vector<2x1x1xf32>
    %23 = tpu.reciprocal %22 {approx = true} : vector<2x1x1xf32> -> vector<2x1x1xf32>
    %24 = arith.mulf %22, %23 : vector<2x1x1xf32>
    %cst_10 = arith.constant 2.000000e+00 : f32
    %25 = vector.broadcast %cst_10 : f32 to vector<2x1x1xf32>
    %26 = arith.subf %25, %24 : vector<2x1x1xf32>
    %27 = arith.mulf %23, %26 : vector<2x1x1xf32>
    %28 = arith.mulf %22, %27 : vector<2x1x1xf32>
    %cst_11 = arith.constant 2.000000e+00 : f32
    %29 = vector.broadcast %cst_11 : f32 to vector<2x1x1xf32>
    %30 = arith.subf %29, %28 : vector<2x1x1xf32>
    %31 = arith.mulf %27, %30 : vector<2x1x1xf32>
    %32 = vector.broadcast %31 : vector<2x1x1xf32> to vector<2x8x1xf32>
    %33 = arith.mulf %20, %32 : vector<2x8x1xf32>
    %c0_12 = arith.constant 0 : index
    %c0_13 = arith.constant 0 : index
    %c0_14 = arith.constant 0 : index
    %34 = vector.load %arg1[%c0_12, %c0_13, %c0_14] : memref<2x8x32xf32, #tpu.memory_space<vmem>>, vector<2x8x32xf32>
    %35 = vector.broadcast %33 : vector<2x8x1xf32> to vector<2x8x32xf32>
    %36 = arith.mulf %35, %34 : vector<2x8x32xf32>
    %cst_15 = arith.constant dense<0.000000e+00> : vector<2x32xf32>
    %37 = vector.multi_reduction <add>, %36, %cst_15 [1] : vector<2x8x32xf32> to vector<2x32xf32>
    %c0_16 = arith.constant 0 : index
    %c0_17 = arith.constant 0 : index
    %38 = vector.load %arg6[%c0_16, %c0_17] : memref<2x32xf32, #tpu.memory_space<vmem>>, vector<2x32xf32>
    tpu.vector_store %arg6[%c0_16, %c0_17], %37 {strides = array<i32>} : memref<2x32xf32, #tpu.memory_space<vmem>>, vector<2x32xf32>,
    %39 = vector.shape_cast %33 : vector<2x8x1xf32> to vector<2x8xf32>
    %c0_18 = arith.constant 0 : index
    %c0_19 = arith.constant 0 : index
    %40 = vector.load %arg7[%c0_18, %c0_19] : memref<2x8xf32, #tpu.memory_space<vmem>>, vector<2x8xf32>
    tpu.vector_store %arg7[%c0_18, %c0_19], %39 {strides = array<i32>} : memref<2x8xf32, #tpu.memory_space<vmem>>, vector<2x8xf32>,
    return
  }
  func.func @transform_0(%arg0: i32) -> (i32, i32, i32) {
    %c0_i32 = arith.constant 0 : i32
    %c0_i32_0 = arith.constant 0 : i32
    %c0_i32_1 = arith.constant 0 : i32
    return %arg0, %c0_i32, %c0_i32_0 : i32, i32, i32
  }
  func.func @transform_1(%arg0: i32) -> (i32, i32, i32) {
    %c0_i32 = arith.constant 0 : i32
    %c0_i32_0 = arith.constant 0 : i32
    %c0_i32_1 = arith.constant 0 : i32
    return %arg0, %c0_i32, %c0_i32_0 : i32, i32, i32
  }
  func.func @transform_2(%arg0: i32) -> (i32, i32) {
    %c0_i32 = arith.constant 0 : i32
    %c0_i32_0 = arith.constant 0 : i32
    return %arg0, %c0_i32 : i32, i32
  }
  func.func @transform_3(%arg0: i32) -> (i32, i32) {
    %c0_i32 = arith.constant 0 : i32
    %c0_i32_0 = arith.constant 0 : i32
    return %arg0, %c0_i32 : i32, i32
  }
  func.func @transform_4(%arg0: i32) -> (i32, i32) {
    %c0_i32 = arith.constant 0 : i32
    %c0_i32_0 = arith.constant 0 : i32
    %c0_i32_1 = arith.constant 0 : i32
    return %c0_i32, %c0_i32_0 : i32, i32
  }
  func.func @transform_5(%arg0: i32) -> (i32, i32) {
    %c0_i32 = arith.constant 0 : i32
    %c0_i32_0 = arith.constant 0 : i32
    return %arg0, %c0_i32 : i32, i32
  }
  func.func @transform_6(%arg0: i32) -> (i32, i32) {
    %c0_i32 = arith.constant 0 : i32
    %c0_i32_0 = arith.constant 0 : i32
    return %arg0, %c0_i32 : i32, i32
  }
}

</mosaic_0001>

<llo_original>
// kernel: tpu_custom_call.1
$region0: #{tpu_custom_call.1}
  #allocation0 [shape = 'u32[]', space=smem, size = 0x4, offset = 0x4, fixed_abs, tag = 'smem constant byte address 0x4 - core index']
  #allocation1 [shape = 'u32[144,128]{1,0:T(1,128)}', space=vmem, size = 0x12000, scoped, tag = 'internal scratch']
  %s0 = inlined_call_operand.hbm [shape: f32[2,8,32], index: 0, kind: input, shape index: {}]
  %s1 = inlined_call_operand.hbm [shape: f32[2,8,32], index: 1, kind: input, shape index: {}]
  %s2 = inlined_call_operand.vmem [shape: f32[2,32], index: 2, kind: input, shape index: {}]
  %s3 = inlined_call_operand.vmem [shape: f32[2,8], index: 3, kind: input, shape index: {}]
  %s4 = inlined_call_operand.vmem [shape: f32[1,32], index: 4, kind: input, shape index: {}]
  %s5 = inlined_call_operand.hbm [shape: f32[2,32], index: 5, kind: output, shape index: {0}]
  %s6 = inlined_call_operand.hbm [shape: f32[2,8], index: 6, kind: output, shape index: {1}]
  %7 = xla_tuple %s5, %s6
  %s8 = sld [smem:[#allocation0]]
  $region46: #{tpu_custom_call.1} parent=0
    _
  %s10 = ssub.s32 1, %s8
  %s11 = scalar_select 0, %s10, %s8
  $region1: #{tpu_custom_call.1} parent=0
    #allocation2 [shape = 'u8[8192]{0}', space=vmem, size = 0x2000, scoped, tag = 'input window, operand 0, single buffered']
    #allocation3 [shape = 's32[1]{0}', space=sflag, size = 0x4, scoped, tag = 'scoped memory for tpu_custom_call.1']
    #allocation4 [shape = 's32[1]{0}', space=sflag, size = 0x4, scoped, tag = 'scoped memory for tpu_custom_call.1']
    #allocation5 [shape = 'u8[8192]{0}', space=vmem, size = 0x2000, scoped, tag = 'input window, operand 1, single buffered']
    #allocation6 [shape = 's32[1]{0}', space=sflag, size = 0x4, scoped, tag = 'scoped memory for tpu_custom_call.1']
    #allocation7 [shape = 'u8[1024]{0}', space=vmem, size = 0x400, scoped, tag = 'output window, operand 0, single buffered']
    #allocation8 [shape = 'u8[1024]{0}', space=vmem, size = 0x400, scoped, tag = 'output window, operand 1, single buffered']
    #allocation9 [shape = 's32[1]{0}', space=sflag, size = 0x4, scoped, tag = 'scoped memory for tpu_custom_call.1']
    %12 = vsyncpa [#allocation3], 0
    %13 = vsyncpa [#allocation6], 0
    %14 = vsyncpa [#allocation4], 0
    %15 = vsyncpa [#allocation9], 0
    // Predicated region
    $region2: #{tpu_custom_call.1} parent=1 // pred_check
      _
    $region3: #{tpu_custom_call.1} parent=1 // pred_check_branch
      %17 = sbr.rel (0) target = $region5
    $region4: #{tpu_custom_call.1} parent=1 // pred_region
      %s19 = ssub.s32 256, 256
      %20 = vsyncadd [#allocation3], %s19
      %s21 = sshll.u32 [#allocation2], 4
      %s22 = int_to_ptr.vmem [resolvable:$true] %s21
      %27 = dma.hbm_to_vmem [thread:$0]  %s0, 256, %s22, [#allocation3], 128, 128, 8
    $region5: #{tpu_custom_call.1} parent=1 // pred_fallthru
      _
    // Predicated region
    $region6: #{tpu_custom_call.1} parent=1 // pred_check
      _
    $region7: #{tpu_custom_call.1} parent=1 // pred_check_branch
      %29 = sbr.rel (0) target = $region9
    $region8: #{tpu_custom_call.1} parent=1 // pred_region
      %s31 = ssub.s32 256, 256
      %32 = vsyncadd [#allocation6], %s31
      %s33 = sshll.u32 [#allocation5], 4
      %s34 = int_to_ptr.vmem [resolvable:$true] %s33
      %39 = dma.hbm_to_vmem [thread:$0]  %s1, 256, %s34, [#allocation6], 128, 128, 8
    $region9: #{tpu_custom_call.1} parent=1 // pred_fallthru
      _
    // Predicated region
    $region10: #{tpu_custom_call.1} parent=1 // pred_check
      _
    $region11: #{tpu_custom_call.1} parent=1 // pred_check_branch
      %41 = sbr.rel (0) target = $region13
    $region12: #{tpu_custom_call.1} parent=1 // pred_region
      _
    $region13: #{tpu_custom_call.1} parent=1 // pred_fallthru
      _
    // Predicated region
    $region14: #{tpu_custom_call.1} parent=1 // pred_check
      _
    $region15: #{tpu_custom_call.1} parent=1 // pred_check_branch
      %43 = sbr.rel (0) target = $region17
    $region16: #{tpu_custom_call.1} parent=1 // pred_region
      _
    $region17: #{tpu_custom_call.1} parent=1 // pred_fallthru
      _
    // Predicated region
    $region18: #{tpu_custom_call.1} parent=1 // pred_check
      _
    $region19: #{tpu_custom_call.1} parent=1 // pred_check_branch
      %45 = sbr.rel (0) target = $region21
    $region20: #{tpu_custom_call.1} parent=1 // pred_region
      _
    $region21: #{tpu_custom_call.1} parent=1 // pred_fallthru
      _
    // Predicated region
    $region22: #{tpu_custom_call.1} parent=1 // pred_check
      _
    $region23: #{tpu_custom_call.1} parent=1 // pred_check_branch
      %47 = sbr.rel (0) target = $region25
    $region24: #{tpu_custom_call.1} parent=1 // pred_region
      %48 = dma.done [#allocation3], 256
    $region25: #{tpu_custom_call.1} parent=1 // pred_fallthru
      _
    // Predicated region
    $region26: #{tpu_custom_call.1} parent=1 // pred_check
      _
    $region27: #{tpu_custom_call.1} parent=1 // pred_check_branch
      %50 = sbr.rel (0) target = $region29
    $region28: #{tpu_custom_call.1} parent=1 // pred_region
      %51 = dma.done [#allocation6], 256
    $region29: #{tpu_custom_call.1} parent=1 // pred_fallthru
      _
    %v52 = vld [vmem:[#allocation5] sm:$0xff]
    %v53 = vld [vmem:[#allocation5 + $0x8] sm:$0xff]
    %v54 = vld [vmem:[%s3] sm:$0x3]
    %v55 = vlaneseq
    %v56 = vshrl.u32 %v55, 7
    %v57 = vsub.s32 0, %v56
    %v58 = vrot.slane %v54, %v57
    %60 = vbcast.lane.b32.xlu0 %v58, 256
    %v61 = vpop.permute.xlu0 %60
    %v62 = vlaneseq
    %v63 = vshrl.u32 %v62, 7
    %v64 = vsub.s32 1, %v63
    %v65 = vrot.slane %v54, %v64
    %67 = vbcast.lane.b32.xlu0 %v65, 256
    %v68 = vpop.permute.xlu0 %67
    %v69 = vmul.f32 %v61, %v52
    %v70 = vmul.f32 %v68, %v53
    %v71 = vld [vmem:[%s2] sm:$0x3]
    %v74 = vunpack.c.l.s4 1966171168
    %v75 = vunpack.c.0.s8 %v74
    %v76 = vlaneseq
    %v77 = vshrl.u32 %v76, 7
    %v78 = vsub.s32 %v75, %v77
    %v79 = vrot.slane %v71, %v78
    %v80 = vcombine.high %v79, %v79
    %v82 = vunpack.c.l.s4 1966171168
    %v83 = vunpack.c.0.s8 %v82
    %v84 = vlaneseq
    %v85 = vshrl.u32 %v84, 7
    %v86 = vsub.s32 %v83, %v85
    %v87 = vrot.slane %v79, %v86
    %v89 = vunpack.c.l.s4 1966171168
    %v90 = vunpack.c.0.s8 %v89
    %v91 = vlaneseq
    %v92 = vshrl.u32 %v91, 7
    %v93 = vsub.s32 %v90, %v92
    %v94 = vrot.slane %v80, %v93
    %v95 = vlaneseq
    %v96 = vshrl.u32 %v95, 7
    %v97 = vsub.s32 0, %v96
    %v98 = vrot.slane %v87, %v97
    %v99 = vlaneseq
    %v100 = vshrl.u32 %v99, 7
    %v101 = vsub.s32 0, %v100
    %v102 = vrot.slane %v94, %v101
    %v105 = vadd.f32 %v69, %v98
    %v106 = vadd.f32 %v70, %v102
    %v107 = vtanh.pop %v105
    %v108 = vtanh.pop %v106
    %v109 = vld [vmem:[%s4] sm:$0x1]
    %v111 = vlaneseq
    %v112 = vshrl.u32 %v111, 7
    %v113 = vsub.s32 0, %v112
    %v114 = vrot.slane %v109, %v113
    %v116 = vmul.f32 %v107, %v114
    %v117 = vmul.f32 %v108, %v114
    %vm118 = vcmask 261120
    %v119 = vsel %vm118, %v116, 0.0
    %120 = vadd.xlane.f32.xlu0 %v119
    %v121 = vpop.xlane.xlu0 %120
    %v122 = vsel %vm118, %v117, 0.0
    %123 = vadd.xlane.f32.xlu0 %v122
    %v124 = vpop.xlane.xlu0 %123
    %v125 = vrot.slane %v121, 4
    %v126 = vmax.f32 %v121, %v125
    %v127 = vrot.slane %v126, 2
    %v128 = vmax.f32 %v126, %v127
    %v129 = vrot.slane %v128, 1
    %v130 = vmax.f32 %v128, %v129
    %v131 = vrot.slane %v124, 4
    %v132 = vmax.f32 %v124, %v131
    %v133 = vrot.slane %v132, 2
    %v134 = vmax.f32 %v132, %v133
    %v135 = vrot.slane %v134, 1
    %v136 = vmax.f32 %v134, %v135
    %v137 = vsub.f32 %v121, %v130
    %v138 = vsub.f32 %v124, %v136
    %v139 = vmul.f32 %v137, 1.442695
    %v140 = vpow.pop %v139
    %v141 = vmul.f32 %v138, 1.442695
    %v142 = vpow.pop %v141
    %v143 = vrot.slane %v140, 4
    %v144 = vadd.f32 %v140, %v143
    %v145 = vrot.slane %v144, 2
    %v146 = vadd.f32 %v144, %v145
    %v147 = vrot.slane %v146, 1
    %v148 = vadd.f32 %v146, %v147
    %v149 = vrot.slane %v142, 4
    %v150 = vadd.f32 %v142, %v149
    %v151 = vrot.slane %v150, 2
    %v152 = vadd.f32 %v150, %v151
    %v153 = vrot.slane %v152, 1
    %v154 = vadd.f32 %v152, %v153
    %v155 = vrcp.pop %v148
    %v156 = vrcp.pop %v154
    %v157 = vmul.f32 %v148, %v155
    %v158 = vmul.f32 %v154, %v156
    %v159 = vsub.f32 2.0, %v157
    %v160 = vsub.f32 2.0, %v158
    %v161 = vmul.f32 %v155, %v159
    %v162 = vmul.f32 %v156, %v160
    %v163 = vmul.f32 %v148, %v161
    %v164 = vmul.f32 %v154, %v162
    %v165 = vsub.f32 2.0, %v163
    %v166 = vsub.f32 2.0, %v164
    %v167 = vmul.f32 %v161, %v165
    %v168 = vmul.f32 %v162, %v166
    %v169 = vmul.f32 %v140, %v167
    %v170 = vmul.f32 %v142, %v168
    %v171 = vld [vmem:[#allocation2] sm:$0xff]
    %v172 = vld [vmem:[#allocation2 + $0x8] sm:$0xff]
    %v173 = vmul.f32 %v169, %v171
    %v174 = vmul.f32 %v170, %v172
    %v175 = vsel %vm118, %v173, 0.0
    %v176 = vrot.slane %v175, 4
    %v177 = vadd.f32 %v175, %v176
    %v178 = vrot.slane %v177, 2
    %v179 = vadd.f32 %v177, %v178
    %v180 = vrot.slane %v179, 1
    %v181 = vadd.f32 %v179, %v180
    %v182 = vsel %vm118, %v174, 0.0
    %v183 = vrot.slane %v182, 4
    %v184 = vadd.f32 %v182, %v183
    %v185 = vrot.slane %v184, 2
    %v186 = vadd.f32 %v184, %v185
    %v187 = vrot.slane %v186, 1
    %v188 = vadd.f32 %v186, %v187
    %vm191 = vcmask 1041409
    %v192 = vsel %vm191, %v188, %v181
    %vm194 = vcmask 254976
    %195 = vst.msk [vmem:[#allocation7] sm:$0x3] %vm194, %v192
    %v198 = vlaneseq
    %v199 = vand.u32 %v198, 127
    %v200 = vlaneseq
    %v201 = vshrl.u32 %v200, 7
    %v202 = vsub.s32 %v199, %v201
    %v203 = vrot.slane %v169, %v202
    %v204 = vlaneseq
    %v205 = vshrl.u32 %v204, 7
    %v206 = vsub.s32 %v199, %v205
    %v207 = vrot.slane %v170, %v206
    %v208 = vsel %vm191, %v207, %v203
    %vm210 = vcmask 58368
    %211 = vst.msk [vmem:[#allocation8] sm:$0x3] %vm210, %v208
    // Predicated region
    $region30: #{tpu_custom_call.1} parent=1 // pred_check
      _
    $region31: #{tpu_custom_call.1} parent=1 // pred_check_branch
      %213 = sbr.rel (0) target = $region33
    $region32: #{tpu_custom_call.1} parent=1 // pred_region
      %s215 = ssub.s32 32, 32
      %216 = vsyncadd [#allocation4], %s215
      %s218 = sshll.u32 [#allocation7], 4
      %s219 = int_to_ptr.vmem [resolvable:$true] %s218
      %221 = dma.vmem_to_hbm [thread:$0]  %s219, 32, %s5, [#allocation4]
    $region33: #{tpu_custom_call.1} parent=1 // pred_fallthru
      _
    // Predicated region
    $region34: #{tpu_custom_call.1} parent=1 // pred_check
      _
    $region35: #{tpu_custom_call.1} parent=1 // pred_check_branch
      %223 = sbr.rel (0) target = $region37
    $region36: #{tpu_custom_call.1} parent=1 // pred_region
      %s225 = ssub.s32 32, 32
      %226 = vsyncadd [#allocation9], %s225
      %s228 = sshll.u32 [#allocation8], 4
      %s229 = int_to_ptr.vmem [resolvable:$true] %s228
      %231 = dma.vmem_to_hbm [thread:$0]  %s229, 32, %s6, [#allocation9]
    $region37: #{tpu_custom_call.1} parent=1 // pred_fallthru
      _
    // Predicated region
    $region38: #{tpu_custom_call.1} parent=1 // pred_check
      _
    $region39: #{tpu_custom_call.1} parent=1 // pred_check_branch
      %233 = sbr.rel (0) target = $region41
    $region40: #{tpu_custom_call.1} parent=1 // pred_region
      %234 = dma.done [#allocation4], 32
    $region41: #{tpu_custom_call.1} parent=1 // pred_fallthru
      _
    // Predicated region
    $region42: #{tpu_custom_call.1} parent=1 // pred_check
      _
    $region43: #{tpu_custom_call.1} parent=1 // pred_check_branch
      %236 = sbr.rel (0) target = $region45
    $region44: #{tpu_custom_call.1} parent=1 // pred_region
      %237 = dma.done [#allocation9], 32
    $region45: #{tpu_custom_call.1} parent=1 // pred_fallthru
      _
    %238 = vsyncpa [#allocation3], 1
    %239 = vsyncpa [#allocation6], 1
    %240 = vsyncpa [#allocation4], 1
    %241 = vsyncpa [#allocation9], 1

</llo_original>
